<compile_context>
chip_gen: v6e
topology: v6e:2x2x1
jax: 0.10.0
libtpu: 0.0.40
codegen_flags: <defaults>
</compile_context>

<pallas_src>
import math
from functools import partial

import numpy as np
import jax
import jax.numpy as jnp
from jax.experimental import pallas as pl
from jax.experimental.pallas import tpu as pltpu

FREQ_DIM = 256                      # TimestepEmbedder frequency_embedding_size
_VMEM_LIMIT = 32 * 1024 * 1024      # conservative: fits default scoped VMEM on v5e/v6e/v7x


# ----------------------------- small helpers -----------------------------
def silu(x):
    return x * jax.nn.sigmoid(x)


def _layernorm(x, w, b, eps=1e-6):
    mu = jnp.mean(x, axis=-1, keepdims=True)
    var = jnp.mean((x - mu) ** 2, axis=-1, keepdims=True)
    return (x - mu) * jax.lax.rsqrt(var + eps) * w + b


def timestep_embedding(t, dim, max_period=10000.0):
    half = dim // 2
    freqs = jnp.exp(
        -math.log(max_period) * jnp.arange(half, dtype=jnp.float32) / half
    )
    args = t.astype(jnp.float32)[:, None] * freqs[None, :]
    return jnp.concatenate([jnp.cos(args), jnp.sin(args)], axis=-1)


def _pick_tile(dim, target):
    """Largest 'nice' tile <= target that divides dim, else the full dim."""
    for t in (target, target // 2, 256, 128):
        if t <= dim and dim % t == 0:
            return t
    return dim


# ----------------------------- Pallas kernels -----------------------------
def _linear_kernel(x_ref, w_ref, b_ref, o_ref, acc_ref, *, activation):
    # x_ref: (tm, tk) bf16, w_ref: (tk, tn) bf16, b_ref: (1, tn) f32
    k = pl.program_id(2)

    @pl.when(k == 0)
    def _():
        acc_ref[...] = jnp.zeros_like(acc_ref)

    acc_ref[...] += jnp.dot(x_ref[...], w_ref[...],
                            preferred_element_type=jnp.float32)

    @pl.when(k == pl.num_programs(2) - 1)
    def _():
        y = acc_ref[...] + b_ref[...]
        if activation == "silu":
            y = y * jax.nn.sigmoid(y)
        o_ref[...] = y.astype(o_ref.dtype)


def linear_pallas(x2d, w_bf16, b, activation=None, out_dtype=jnp.bfloat16):
    """y = act(x2d @ w + b); x2d (M,K) bf16, w (K,N) bf16, b (N,) f32."""
    M, K = x2d.shape
    N = w_bf16.shape[1]
    tm = _pick_tile(M, 256)
    tk = _pick_tile(K, 1024)     # big K tiles: bf16 weight tile 1024x512 = 1 MB
    tn = _pick_tile(N, 512)
    grid = (M // tm, N // tn, K // tk)
    return pl.pallas_call(
        partial(_linear_kernel, activation=activation),
        out_shape=jax.ShapeDtypeStruct((M, N), out_dtype),
        grid=grid,
        in_specs=[
            pl.BlockSpec((tm, tk), lambda i, j, k: (i, k)),
            pl.BlockSpec((tk, tn), lambda i, j, k: (k, j)),
            pl.BlockSpec((1, tn), lambda i, j, k: (0, j)),
        ],
        out_specs=pl.BlockSpec((tm, tn), lambda i, j, k: (i, j)),
        scratch_shapes=[pltpu.VMEM((tm, tn), jnp.float32)],
        compiler_params=pltpu.CompilerParams(
            dimension_semantics=("parallel", "parallel", "arbitrary"),
            vmem_limit_bytes=_VMEM_LIMIT),
    )(x2d, w_bf16, b.reshape(1, N).astype(jnp.float32))


def _linear_gate_kernel(x_ref, w_ref, b_ref, res_ref, gate_ref, o_ref, acc_ref):
    # Fused epilogue: out = residual + (x @ w + b) * gate
    k = pl.program_id(2)

    @pl.when(k == 0)
    def _():
        acc_ref[...] = jnp.zeros_like(acc_ref)

    acc_ref[...] += jnp.dot(x_ref[...], w_ref[...],
                            preferred_element_type=jnp.float32)

    @pl.when(k == pl.num_programs(2) - 1)
    def _():
        y = (acc_ref[...] + b_ref[...]) * gate_ref[0] + res_ref[...]
        o_ref[...] = y.astype(o_ref.dtype)


def linear_gate_pallas(x2d, w_bf16, b, res2d, gate, seq_len, out_dtype=jnp.float32):
    """out = res2d + (x2d @ w + b) * gate[batch];  x2d (B*L,K) bf16, gate (B,N) f32."""
    M, K = x2d.shape
    N = w_bf16.shape[1]
    B = gate.shape[0]
    tm = _pick_tile(seq_len, 256)   # tm divides L -> each M tile lies in one batch row
    tk = _pick_tile(K, 1024)
    tn = _pick_tile(N, 512)
    grid = (M // tm, N // tn, K // tk)
    gate3 = gate.reshape(B, 1, N).astype(jnp.float32)
    return pl.pallas_call(
        _linear_gate_kernel,
        out_shape=jax.ShapeDtypeStruct((M, N), out_dtype),
        grid=grid,
        in_specs=[
            pl.BlockSpec((tm, tk), lambda i, j, k: (i, k)),
            pl.BlockSpec((tk, tn), lambda i, j, k: (k, j)),
            pl.BlockSpec((1, tn), lambda i, j, k: (0, j)),
            pl.BlockSpec((tm, tn), lambda i, j, k: (i, j)),                    # residual
            pl.BlockSpec((1, 1, tn), lambda i, j, k: (i * tm // seq_len, 0, j)),  # gate/batch
        ],
        out_specs=pl.BlockSpec((tm, tn), lambda i, j, k: (i, j)),
        scratch_shapes=[pltpu.VMEM((tm, tn), jnp.float32)],
        compiler_params=pltpu.CompilerParams(
            dimension_semantics=("parallel", "parallel", "arbitrary"),
            vmem_limit_bytes=_VMEM_LIMIT),
    )(x2d, w_bf16, b.reshape(1, N).astype(jnp.float32), res2d, gate3)


def _ln_kernel(eps, x_ref, w_ref, b_ref, o_ref):
    x = x_ref[...]                                   # (tm, D) f32
    mu = jnp.mean(x, axis=-1, keepdims=True)
    var = jnp.mean((x - mu) ** 2, axis=-1, keepdims=True)
    y = (x - mu) * jax.lax.rsqrt(var + eps) * w_ref[...] + b_ref[...]
    o_ref[...] = y.astype(o_ref.dtype)


def layernorm_pallas(x2d, w, b, eps=1e-6, out_dtype=jnp.bfloat16):
    M, D = x2d.shape
    tm = _pick_tile(M, 256)
    return pl.pallas_call(
        partial(_ln_kernel, eps),
        out_shape=jax.ShapeDtypeStruct((M, D), out_dtype),
        grid=(M // tm,),
        in_specs=[
            pl.BlockSpec((tm, D), lambda i: (i, 0)),
            pl.BlockSpec((1, D), lambda i: (0, 0)),
            pl.BlockSpec((1, D), lambda i: (0, 0)),
        ],
        out_specs=pl.BlockSpec((tm, D), lambda i: (i, 0)),
        compiler_params=pltpu.CompilerParams(
            dimension_semantics=("parallel",),
            vmem_limit_bytes=_VMEM_LIMIT),
    )(x2d, w.reshape(1, D).astype(jnp.float32), b.reshape(1, D).astype(jnp.float32))


def _attn_kernel(scale, q_ref, k_ref, v_ref, mq_ref, mk_ref, o_ref):
    # q_ref (1, tq, Dh) bf16 | k_ref/v_ref (1, L, Dh) bf16
    # mq_ref (1, tq, 1) f32  | mk_ref (1, 1, L) f32    | o_ref (1, tq, Dh) bf16
    q = q_ref[0]
    k = k_ref[0]
    v = v_ref[0]
    # q @ k^T without an explicit transpose: contract dim 1 of both operands.
    s = jax.lax.dot_general(q, k, (((1,), (1,)), ((), ())),
                            preferred_element_type=jnp.float32) * scale   # (tq, L)
    # Rebuild the mask bias on the VPU (no O(L^2) HBM bias stream).
    allowed = (mq_ref[0] * mk_ref[0]) > 0.0                               # (tq, L)
    col = jax.lax.broadcasted_iota(jnp.int32, s.shape, 1)
    allowed = jnp.logical_or(allowed, col == 0)                           # column 0 forced
    s = jnp.where(allowed, s, -1e30)
    s = s - jnp.max(s, axis=-1, keepdims=True)                            # f32 softmax
    p = jnp.exp(s)
    denom = jnp.sum(p, axis=-1, keepdims=True)
    o = jnp.dot(p.astype(jnp.bfloat16), v, preferred_element_type=jnp.float32)
    # Normalize AFTER P@V: scale (tq,Dh) instead of (tq,L); reciprocal on EUP.
    o = o * pl.reciprocal(denom, approx=True)
    o_ref[0] = o.astype(o_ref.dtype)


def attention_pallas(qkv_bf16, mask_q, mask_k, num_heads):
    """qkv (B,L,3D) bf16 -> attn out (B,L,D) bf16.  Grid over (batch, head, q-block)."""
    B, L, threeD = qkv_bf16.shape
    D = threeD // 3
    Dh = D // num_heads
    tq = _pick_tile(L, 128)
    scale = 1.0 / math.sqrt(Dh)
    grid = (B, num_heads, L // tq)
    return pl.pallas_call(
        partial(_attn_kernel, scale),
        out_shape=jax.ShapeDtypeStruct((B, L, D), jnp.bfloat16),
        grid=grid,
        in_specs=[
            # per-head slices of the (B,L,3D) qkv array (same array passed 3x)
            pl.BlockSpec((1, tq, Dh), lambda b, h, qi: (b, qi, h)),
            pl.BlockSpec((1, L, Dh), lambda b, h, qi: (b, 0, num_heads + h)),
            pl.BlockSpec((1, L, Dh), lambda b, h, qi: (b, 0, 2 * num_heads + h)),
            pl.BlockSpec((1, tq, 1), lambda b, h, qi: (b, qi, 0)),
            pl.BlockSpec((1, 1, L), lambda b, h, qi: (b, 0, 0)),
        ],
        out_specs=pl.BlockSpec((1, tq, Dh), lambda b, h, qi: (b, qi, h)),
        compiler_params=pltpu.CompilerParams(
            dimension_semantics=("parallel", "parallel", "parallel"),
            vmem_limit_bytes=_VMEM_LIMIT),
    )(qkv_bf16, qkv_bf16, qkv_bf16, mask_q, mask_k)


# ----------------------------- glue (plain JAX) -----------------------------
def embed_and_condition(x, t, mask, params):
    # t_embedder: sinusoidal(t) -> Linear -> SiLU -> Linear
    freq = timestep_embedding(t, FREQ_DIM)
    h = silu(jnp.dot(freq, params["t_w1"]) + params["t_b1"])
    t_emb = jnp.dot(h, params["t_w2"]) + params["t_b2"]

    # context-aware representation (masked mean over seq)
    if mask is None:
        ctx = x.mean(axis=1)
    else:
        mf = mask.astype(jnp.float32)[..., None]
        ctx = (x * mf).sum(axis=1) / mf.sum(axis=1)

    # c_embedder (TextProjection): Linear -> SiLU -> Linear
    h = silu(jnp.dot(ctx, params["c_w1"]) + params["c_b1"])
    c_emb = jnp.dot(h, params["c_w2"]) + params["c_b2"]
    return t_emb + c_emb


def refiner_block_forward(h, c, mask_q, mask_k, p, num_heads, L):
    B, _, D = h.shape
    # adaLN gates hoisted out of the Pallas hot path (M=B matmul -> glue).
    gates = jnp.dot(silu(c), p["ada_w"]) + p["ada_b"]           # (B, 2D) f32
    gate_msa = gates[:, :D]
    gate_mlp = gates[:, D:]

    h2d = h.reshape(B * L, D)                                   # f32 residual stream

    # ---- self-attention branch ----
    nx = layernorm_pallas(h2d, p["ln1_w"], p["ln1_b"])          # bf16
    qkv = linear_pallas(nx, p["qkv_w"], p["qkv_b"]).reshape(B, L, 3 * D)   # bf16
    attn = attention_pallas(qkv, mask_q, mask_k, num_heads)     # (B,L,D) bf16
    # proj matmul with fused residual + gate epilogue
    h2d = linear_gate_pallas(attn.reshape(B * L, D),
                             p["proj_w"], p["proj_b"], h2d, gate_msa, L)

    # ---- MLP branch ----
    nx2 = layernorm_pallas(h2d, p["ln2_w"], p["ln2_b"])         # bf16
    h1 = linear_pallas(nx2, p["fc1_w"], p["fc1_b"], activation="silu")      # bf16
    h2d = linear_gate_pallas(h1, p["fc2_w"], p["fc2_b"], h2d, gate_mlp, L)
    return h2d.reshape(B, L, D)


def single_token_refiner_forward(x, t, mask, params, num_heads):
    B, L, C = x.shape
    D = params["in_w"].shape[1]
    c = embed_and_condition(x, t, mask, params)                 # f32 glue

    mask_f = (jnp.ones((B, L), jnp.float32) if mask is None
              else mask.astype(jnp.float32))
    mask_q = mask_f.reshape(B, L, 1)
    mask_k = mask_f.reshape(B, 1, L)

    h = linear_pallas(x.reshape(B * L, C).astype(jnp.bfloat16),
                      params["in_w"], params["in_b"],
                      out_dtype=jnp.float32).reshape(B, L, D)
    for blk in params["blocks"]:
        h = refiner_block_forward(h, c, mask_q, mask_k, blk, num_heads, L)
    return h


def prepare_params(params):
    """Pre-cast all large weight matrices to bf16 ONCE (outside the forward)."""
    out = dict(params)
    out["in_w"] = params["in_w"].astype(jnp.bfloat16)
    blocks = []
    for p in params["blocks"]:
        q = dict(p)
        for k in ("qkv_w", "proj_w", "fc1_w", "fc2_w"):
            q[k] = p[k].astype(jnp.bfloat16)
        blocks.append(q)
    out["blocks"] = blocks
    return out


# ----------------------------- pure-JAX f32 reference -----------------------------
def _ref_block(x, c, mask, p, H):
    B, L, D = x.shape
    Dh = D // H
    gates = jnp.dot(silu(c), p["ada_w"]) + p["ada_b"]
    gate_msa, gate_mlp = gates[:, :D], gates[:, D:]

    nx = _layernorm(x, p["ln1_w"], p["ln1_b"])
    qkv = jnp.dot(nx, p["qkv_w"]) + p["qkv_b"]
    q = qkv[..., 0 * D:1 * D].reshape(B, L, H, Dh)
    k = qkv[..., 1 * D:2 * D].reshape(B, L, H, Dh)
    v = qkv[..., 2 * D:3 * D].reshape(B, L, H, Dh)

    allowed = (mask[:, :, None] * mask[:, None, :]) > 0
    allowed = allowed.at[:, :, 0].set(True)
    bias = jnp.where(allowed, 0.0, -1e30)

    s = jnp.einsum("bqhd,bkhd->bhqk", q, k) / math.sqrt(Dh) + bias[:, None]
    p_attn = jax.nn.softmax(s, axis=-1)
    attn = jnp.einsum("bhqk,bkhd->bqhd", p_attn, v).reshape(B, L, D)

    attn_out = jnp.dot(attn, p["proj_w"]) + p["proj_b"]
    x = x + attn_out * gate_msa[:, None, :]

    nx2 = _layernorm(x, p["ln2_w"], p["ln2_b"])
    hmlp = silu(jnp.dot(nx2, p["fc1_w"]) + p["fc1_b"])
    mlp_out = jnp.dot(hmlp, p["fc2_w"]) + p["fc2_b"]
    x = x + mlp_out * gate_mlp[:, None, :]
    return x


def reference_forward(x, t, mask, params, num_heads):
    B, L, _ = x.shape
    c = embed_and_condition(x, t, mask, params)
    mask_arr = (jnp.ones((B, L), jnp.float32) if mask is None
                else mask.astype(jnp.float32))
    h = jnp.dot(x, params["in_w"]) + params["in_b"]
    for blk in params["blocks"]:
        h = _ref_block(h, c, mask_arr, blk, num_heads)
    return h


# ----------------------------- parameter init -----------------------------
def init_params(key, in_channels, hidden, depth, mlp_ratio=4.0, freq_dim=FREQ_DIM):
    mlp_hidden = int(hidden * mlp_ratio)
    keys = iter(jax.random.split(key, 256))

    def w(shape, scale=0.02):
        return scale * jax.random.normal(next(keys), shape, jnp.float32)

    params = dict(
        in_w=w((in_channels, hidden)), in_b=w((hidden,)),
        t_w1=w((freq_dim, hidden)), t_b1=w((hidden,)),
        t_w2=w((hidden, hidden)), t_b2=w((hidden,)),
        c_w1=w((in_channels, hidden)), c_b1=w((hidden,)),
        c_w2=w((hidden, hidden)), c_b2=w((hidden,)),
    )
    blocks = []
    for _ in range(depth):
        blocks.append(dict(
            ln1_w=jnp.ones((hidden,), jnp.float32),
            ln1_b=jnp.zeros((hidden,), jnp.float32),
            qkv_w=w((hidden, 3 * hidden)), qkv_b=w((3 * hidden,)),
            proj_w=w((hidden, hidden)), proj_b=w((hidden,)),
            ln2_w=jnp.ones((hidden,), jnp.float32),
            ln2_b=jnp.zeros((hidden,), jnp.float32),
            fc1_w=w((hidden, mlp_hidden)), fc1_b=w((mlp_hidden,)),
            fc2_w=w((mlp_hidden, hidden)), fc2_b=w((hidden,)),
            # NOTE: PyTorch zero-inits adaLN_modulation; use non-zero values so
            # the gated residual paths are actually exercised by the test.
            ada_w=w((hidden, 2 * hidden), scale=0.5),
            ada_b=w((2 * hidden,), scale=0.5),
        ))
    params["blocks"] = blocks
    return params


# ----------------------------- main -----------------------------
if __name__ == "__main__":
    # Small shapes; head_dim = D / H = 128 so attention blocks are lane-dense.
    B, L, C, D, H, depth = 2, 8, 64, 256, 2, 2

    key = jax.random.PRNGKey(0)
    kx, kp = jax.random.split(key, 2)
    x = jax.random.normal(kx, (B, L, C), jnp.float32)
    t = jnp.array([3, 17], dtype=jnp.int32)
    mask = jnp.array([[1, 1, 1, 1, 1, 1, 1, 1],
                      [1, 1, 1, 1, 1, 0, 0, 0]], dtype=jnp.int32)
    params = init_params(kp, C, D, depth)
    pparams = prepare_params(params)        # bf16 weights, cast once

    out = single_token_refiner_forward(x, t, mask, pparams, H)
    out = jax.block_until_ready(out)

    ref = reference_forward(x, t, mask, params, H)
    np.testing.assert_allclose(np.asarray(out), np.asarray(ref),
                               rtol=2e-2, atol=2e-2)

    print("KERNEL_OK")
</pallas_src>

<mosaic_0001>
module attributes {stable_mosaic.version = 11 : i64} {
  func.func @_linear_kernel(%arg0: i32, %arg1: i32, %arg2: i32, %arg3: memref<16x64xbf16, #tpu.memory_space<vmem>>, %arg4: memref<64x256xbf16, #tpu.memory_space<vmem>>, %arg5: memref<1x256xf32, #tpu.memory_space<vmem>>, %arg6: memref<16x256xf32, #tpu.memory_space<vmem>>, %arg7: memref<16x256xf32, #tpu.memory_space<vmem>>) attributes {dimension_semantics = [#tpu.dimension_semantics<parallel>, #tpu.dimension_semantics<parallel>, #tpu.dimension_semantics<arbitrary>], iteration_bounds = array<i64: 1, 1, 1>, scalar_prefetch = 0 : i64, scratch_operands = 1 : i64, tpu.core_type = #tpu.core_type<tc>, window_params = [{transform_indices = @transform_0, window_bounds = array<i64: 16, 64>}, {transform_indices = @transform_1, window_bounds = array<i64: 64, 256>}, {transform_indices = @transform_2, window_bounds = array<i64: 1, 256>}, {transform_indices = @transform_3, window_bounds = array<i64: 16, 256>}]} {
    %c0_i32 = arith.constant 0 : i32
    %0 = arith.cmpi eq, %arg2, %c0_i32 : i32
    %1 = arith.extui %0 : i1 to i32
    %c0_i32_0 = arith.constant 0 : i32
    %2 = arith.cmpi ne, %1, %c0_i32_0 : i32
    scf.if %2 {
      %cst_10 = arith.constant 0.000000e+00 : f32
      %12 = vector.broadcast %cst_10 : f32 to vector<16x256xf32>
      %c0_11 = arith.constant 0 : index
      %c0_12 = arith.constant 0 : index
      %13 = vector.load %arg7[%c0_11, %c0_12] : memref<16x256xf32, #tpu.memory_space<vmem>>, vector<16x256xf32>
      tpu.vector_store %arg7[%c0_11, %c0_12], %12 {strides = array<i32>} : memref<16x256xf32, #tpu.memory_space<vmem>>, vector<16x256xf32>,
    } else {
    }
    %c0 = arith.constant 0 : index
    %c0_1 = arith.constant 0 : index
    %3 = vector.load %arg7[%c0, %c0_1] : memref<16x256xf32, #tpu.memory_space<vmem>>, vector<16x256xf32>
    %c0_2 = arith.constant 0 : index
    %c0_3 = arith.constant 0 : index
    %4 = vector.load %arg3[%c0_2, %c0_3] : memref<16x64xbf16, #tpu.memory_space<vmem>>, vector<16x64xbf16>
    %c0_4 = arith.constant 0 : index
    %c0_5 = arith.constant 0 : index
    %5 = vector.load %arg4[%c0_4, %c0_5] : memref<64x256xbf16, #tpu.memory_space<vmem>>, vector<64x256xbf16>
    %cst = arith.constant dense<0.000000e+00> : vector<16x256xf32>
    %6 = tpu.matmul %4, %5, %cst {dimension_numbers = #tpu.dot_dimension_numbers<[1], [0], [0], [1], [0, 0, 1, 1], [], []>} : vector<16x64xbf16>, vector<64x256xbf16>, vector<16x256xf32> -> vector<16x256xf32>
    %7 = arith.addf %3, %6 : vector<16x256xf32>
    %c0_6 = arith.constant 0 : index
    %c0_7 = arith.constant 0 : index
    %8 = vector.load %arg7[%c0_6, %c0_7] : memref<16x256xf32, #tpu.memory_space<vmem>>, vector<16x256xf32>
    tpu.vector_store %arg7[%c0_6, %c0_7], %7 {strides = array<i32>} : memref<16x256xf32, #tpu.memory_space<vmem>>, vector<16x256xf32>,
    %c0_i32_8 = arith.constant 0 : i32
    %9 = arith.cmpi eq, %arg2, %c0_i32_8 : i32
    %10 = arith.extui %9 : i1 to i32
    %c0_i32_9 = arith.constant 0 : i32
    %11 = arith.cmpi ne, %10, %c0_i32_9 : i32
    scf.if %11 {
      %c0_10 = arith.constant 0 : index
      %c0_11 = arith.constant 0 : index
      %12 = vector.load %arg7[%c0_10, %c0_11] : memref<16x256xf32, #tpu.memory_space<vmem>>, vector<16x256xf32>
      %c0_12 = arith.constant 0 : index
      %c0_13 = arith.constant 0 : index
      %13 = vector.load %arg5[%c0_12, %c0_13] : memref<1x256xf32, #tpu.memory_space<vmem>>, vector<1x256xf32>
      %14 = vector.broadcast %13 : vector<1x256xf32> to vector<16x256xf32>
      %15 = arith.addf %12, %14 : vector<16x256xf32>
      %c0_14 = arith.constant 0 : index
      %c0_15 = arith.constant 0 : index
      %16 = vector.load %arg6[%c0_14, %c0_15] : memref<16x256xf32, #tpu.memory_space<vmem>>, vector<16x256xf32>
      tpu.vector_store %arg6[%c0_14, %c0_15], %15 {strides = array<i32>} : memref<16x256xf32, #tpu.memory_space<vmem>>, vector<16x256xf32>,
    } else {
    }
    return
  }
  func.func @transform_0(%arg0: i32, %arg1: i32, %arg2: i32) -> (i32, i32) {
    %c0_i32 = arith.constant 0 : i32
    return %arg0, %arg2 : i32, i32
  }
  func.func @transform_1(%arg0: i32, %arg1: i32, %arg2: i32) -> (i32, i32) {
    %c0_i32 = arith.constant 0 : i32
    return %arg2, %arg1 : i32, i32
  }
  func.func @transform_2(%arg0: i32, %arg1: i32, %arg2: i32) -> (i32, i32) {
    %c0_i32 = arith.constant 0 : i32
    %c0_i32_0 = arith.constant 0 : i32
    return %c0_i32, %arg1 : i32, i32
  }
  func.func @transform_3(%arg0: i32, %arg1: i32, %arg2: i32) -> (i32, i32) {
    %c0_i32 = arith.constant 0 : i32
    return %arg0, %arg1 : i32, i32
  }
}

</mosaic_0001>

<llo_original>
// kernel: tpu_custom_call.1
$region0: #{tpu_custom_call.1}
  #allocation0 [shape = 'u32[]', space=smem, size = 0x4, offset = 0x4, fixed_abs, tag = 'smem constant byte address 0x4 - core index']
  #allocation1 [shape = 'u32[144,128]{1,0:T(1,128)}', space=vmem, size = 0x12000, scoped, tag = 'internal scratch']
  #allocation2 [shape = 'f32[16,256]{1,0:T(8,128)}', space=vmem, size = 0x4000, scoped, tag = 'scratch operand']
  %s0 = inlined_call_operand.hbm [shape: bf16[16,64], index: 0, kind: input, shape index: {}]
  %s1 = inlined_call_operand.hbm [shape: bf16[64,256], index: 1, kind: input, shape index: {}]
  %s2 = inlined_call_operand.vmem [shape: f32[1,256], index: 2, kind: input, shape index: {}]
  %s3 = inlined_call_operand.hbm [shape: f32[16,256], index: 3, kind: output, shape index: {}]
  %s4 = sld [smem:[#allocation0]]
  $region38: #{tpu_custom_call.1} parent=0
    _
  %s6 = ssub.s32 1, %s4
  %s7 = scalar_select 0, %s6, %s4
  $region1: #{tpu_custom_call.1} parent=0
    #allocation3 [shape = 'u8[4096]{0}', space=vmem, size = 0x1000, scoped, tag = 'input window, operand 0, single buffered']
    #allocation4 [shape = 's32[1]{0}', space=sflag, size = 0x4, scoped, tag = 'scoped memory for tpu_custom_call.1']
    #allocation5 [shape = 's32[1]{0}', space=sflag, size = 0x4, scoped, tag = 'scoped memory for tpu_custom_call.1']
    #allocation6 [shape = 'u8[32768]{0}', space=vmem, size = 0x8000, scoped, tag = 'input window, operand 1, single buffered']
    #allocation7 [shape = 's32[1]{0}', space=sflag, size = 0x4, scoped, tag = 'scoped memory for tpu_custom_call.1']
    #allocation8 [shape = 'u8[16384]{0}', space=vmem, size = 0x4000, scoped, tag = 'output window, operand 0, single buffered']
    %8 = vsyncpa [#allocation4], 0
    %9 = vsyncpa [#allocation7], 0
    %10 = vsyncpa [#allocation5], 0
    // Predicated region
    $region2: #{tpu_custom_call.1} parent=1 // pred_check
      _
    $region3: #{tpu_custom_call.1} parent=1 // pred_check_branch
      %12 = sbr.rel (0) target = $region5
    $region4: #{tpu_custom_call.1} parent=1 // pred_region
      %s14 = ssub.s32 128, 128
      %15 = vsyncadd [#allocation4], %s14
      %s16 = sshll.u32 [#allocation3], 4
      %s17 = int_to_ptr.vmem [resolvable:$true] %s16
      %22 = dma.hbm_to_vmem [thread:$0]  %s0, 128, %s17, [#allocation4], 64, 64, 4
    $region5: #{tpu_custom_call.1} parent=1 // pred_fallthru
      _
    // Predicated region
    $region6: #{tpu_custom_call.1} parent=1 // pred_check
      _
    $region7: #{tpu_custom_call.1} parent=1 // pred_check_branch
      %24 = sbr.rel (0) target = $region9
    $region8: #{tpu_custom_call.1} parent=1 // pred_region
      %s26 = ssub.s32 1024, 1024
      %27 = vsyncadd [#allocation7], %s26
      %s28 = sshll.u32 [#allocation6], 4
      %s29 = int_to_ptr.vmem [resolvable:$true] %s28
      %34 = dma.hbm_to_vmem [thread:$0]  %s1, 1024, %s29, [#allocation7], 128, 128, 8
    $region9: #{tpu_custom_call.1} parent=1 // pred_fallthru
      _
    // Predicated region
    $region10: #{tpu_custom_call.1} parent=1 // pred_check
      _
    $region11: #{tpu_custom_call.1} parent=1 // pred_check_branch
      %36 = sbr.rel (0) target = $region13
    $region12: #{tpu_custom_call.1} parent=1 // pred_region
      _
    $region13: #{tpu_custom_call.1} parent=1 // pred_fallthru
      _
    // Predicated region
    $region14: #{tpu_custom_call.1} parent=1 // pred_check
      _
    $region15: #{tpu_custom_call.1} parent=1 // pred_check_branch
      %38 = sbr.rel (0) target = $region17
    $region16: #{tpu_custom_call.1} parent=1 // pred_region
      %39 = dma.done [#allocation4], 128
    $region17: #{tpu_custom_call.1} parent=1 // pred_fallthru
      _
    // Predicated region
    $region18: #{tpu_custom_call.1} parent=1 // pred_check
      _
    $region19: #{tpu_custom_call.1} parent=1 // pred_check_branch
      %41 = sbr.rel (0) target = $region21
    $region20: #{tpu_custom_call.1} parent=1 // pred_region
      %42 = dma.done [#allocation7], 1024
    $region21: #{tpu_custom_call.1} parent=1 // pred_fallthru
      _
    %p44 = scmp.eq.s32.totalorder 0, 0
    // Predicated region
    $region22: #{tpu_custom_call.1} parent=1 // pred_check
      %p45 = pneg %p44
    $region23: #{tpu_custom_call.1} parent=1 // pred_check_branch
      %47 = sbr.rel (%p45) target = $region25
    $region24: #{tpu_custom_call.1} parent=1 // pred_region
      %48 = vst [vmem:[#allocation2] sm:$0xff] 0.0
      %49 = vst [vmem:[#allocation2 + $0x8] sm:$0xff] 0.0
      %50 = vst [vmem:[#allocation2 + $0x10] sm:$0xff] 0.0
      %51 = vst [vmem:[#allocation2 + $0x18] sm:$0xff] 0.0
    $region25: #{tpu_custom_call.1} parent=1 // pred_fallthru
      _
    %v52 = vld [vmem:[#allocation2] sm:$0xff]
    %v53 = vld [vmem:[#allocation2 + $0x8] sm:$0xff]
    %v54 = vld [vmem:[#allocation2 + $0x10] sm:$0xff]
    %v55 = vld [vmem:[#allocation2 + $0x18] sm:$0xff]
    %v56 = vld [vmem:[#allocation3] sm:$0xf]
    %v57 = vld [vmem:[#allocation3 + $0x4] sm:$0xf]
    %v58 = vld [vmem:[#allocation6] sm:$0xff]
    %v59 = vld [vmem:[#allocation6 + $0x8] sm:$0xff]
    %v60 = vld [vmem:[#allocation6 + $0x10] sm:$0xff]
    %v61 = vld [vmem:[#allocation6 + $0x18] sm:$0xff]
    %v62 = vld [vmem:[#allocation6 + $0x20] sm:$0xff]
    %v63 = vld [vmem:[#allocation6 + $0x28] sm:$0xff]
    %v64 = vld [vmem:[#allocation6 + $0x30] sm:$0xff]
    %v65 = vld [vmem:[#allocation6 + $0x38] sm:$0xff]
    %v68 = vunpack.c.l.b16 %v56
    %v69 = vunpack.c.l.b16 %v57
    %v70 = vpack.c.b16 %v69, %v68
    %v79 = vunpack.c.l.b16 %v58
    %v80 = vunpack.c.h.b16 %v58
    %v81 = vunpack.c.l.b16 %v59
    %v82 = vunpack.c.h.b16 %v59
    %v83 = vunpack.c.l.b16 %v60
    %v84 = vunpack.c.h.b16 %v60
    %v85 = vunpack.c.l.b16 %v61
    %v86 = vunpack.c.h.b16 %v61
    %v87 = vunpack.c.l.b16 %v62
    %v88 = vunpack.c.h.b16 %v62
    %v89 = vunpack.c.l.b16 %v63
    %v90 = vunpack.c.h.b16 %v63
    %v91 = vunpack.c.l.b16 %v64
    %v92 = vunpack.c.h.b16 %v64
    %v93 = vunpack.c.l.b16 %v65
    %v94 = vunpack.c.h.b16 %v65
    %v95 = vpack.c.b16 %v81, %v79
    %v96 = vpack.c.b16 %v82, %v80
    %v97 = vpack.c.b16 %v85, %v83
    %v98 = vpack.c.b16 %v86, %v84
    %v99 = vpack.c.b16 %v89, %v87
    %v100 = vpack.c.b16 %v90, %v88
    %v101 = vpack.c.b16 %v93, %v91
    %v102 = vpack.c.b16 %v94, %v92
    %vm111 = vcmask 523264
    %v113 = vsel %vm111, %v70, 0
    %115 = vmatprep.subr.bf16.mxu0 0
    %116 = vmatpush1.bf16.msra.mxu0 0
    %117 = vmatprep.subr.bf16.mxu0 0
    %118 = vmatpush1.bf16.msra.mxu0 0
    %119 = vmatprep.subr.bf16.mxu0 0
    %120 = vmatpush1.bf16.msra.mxu0 0
    %121 = vmatprep.subr.bf16.mxu0 0
    %122 = vmatpush1.bf16.msra.mxu0 0
    %123 = vmatprep.subr.bf16.mxu0 %v102
    %124 = vmatpush1.bf16.msra.mxu0 %v101
    %125 = vmatprep.subr.bf16.mxu0 %v100
    %126 = vmatpush1.bf16.msra.mxu0 %v99
    %127 = vmatprep.subr.bf16.mxu0 %v98
    %128 = vmatpush1.bf16.msra.mxu0 %v97
    %129 = vmatprep.subr.bf16.mxu0 %v96
    %130 = vmatpush1.bf16.msra.mxu0 %v95
    %131 = vmatprep.subr.bf16.mxu0 0
    %132 = vmatpush2.bf16.msra.mxu0 0
    %133 = vmatprep.subr.bf16.mxu0 0
    %134 = vmatpush2.bf16.msra.mxu0 0
    %135 = vmatprep.subr.bf16.mxu0 0
    %136 = vmatpush2.bf16.msra.mxu0 0
    %137 = vmatprep.subr.bf16.mxu0 0
    %138 = vmatpush2.bf16.msra.mxu0 0
    %139 = vmatprep.subr.bf16.mxu0 0
    %140 = vmatpush2.bf16.msra.mxu0 0
    %141 = vmatprep.subr.bf16.mxu0 0
    %142 = vmatpush2.bf16.msra.mxu0 0
    %143 = vmatprep.subr.bf16.mxu0 0
    %144 = vmatpush2.bf16.msra.mxu0 0
    %145 = vmatprep.subr.bf16.mxu0 0
    %146 = vmatpush2.bf16.msra.mxu0 0
    %147 = vmatprep.mubr.bf16.mxu0 0
    %148 = vmatmul.mubr.bf16.gmra.mxu0 %v113
    %v149 = vpop.f32.mrf.mxu0
    %v150 = vadd.f32 0.0, %v149
    %v151 = vpop.f32.mrf.mxu0
    %v152 = vadd.f32 0.0, %v151
    %v153 = vpop.f32.mrf.mxu0
    %v154 = vadd.f32 0.0, %v153
    %v155 = vpop.f32.mrf.mxu0
    %v156 = vadd.f32 0.0, %v155
    %157 = vdwg.mxu0
    %v158 = vadd.f32 %v52, %v150
    %v159 = vadd.f32 %v53, %v152
    %v160 = vadd.f32 %v54, %v154
    %v161 = vadd.f32 %v55, %v156
    %162 = vst [vmem:[#allocation2] sm:$0xff] %v158
    %163 = vst [vmem:[#allocation2 + $0x8] sm:$0xff] %v159
    %164 = vst [vmem:[#allocation2 + $0x10] sm:$0xff] %v160
    %165 = vst [vmem:[#allocation2 + $0x18] sm:$0xff] %v161
    // Predicated region
    $region26: #{tpu_custom_call.1} parent=1 // pred_check
      %p166 = pneg %p44
    $region27: #{tpu_custom_call.1} parent=1 // pred_check_branch
      %168 = sbr.rel (%p166) target = $region29
    $region28: #{tpu_custom_call.1} parent=1 // pred_region
      %v169 = vld [vmem:[#allocation2] sm:$0xff]
      %v170 = vld [vmem:[#allocation2 + $0x8] sm:$0xff]
      %v171 = vld [vmem:[#allocation2 + $0x10] sm:$0xff]
      %v172 = vld [vmem:[#allocation2 + $0x18] sm:$0xff]
      %v173 = vld [vmem:[%s2] sm:$0x3]
      %v175 = vlaneseq
      %v176 = vshrl.u32 %v175, 7
      %v177 = vsub.s32 0, %v176
      %v178 = vrot.slane %v173, %v177
      %v179 = vlaneseq
      %v180 = vshrl.u32 %v179, 7
      %v181 = vsub.s32 1, %v180
      %v182 = vrot.slane %v173, %v181
      %v185 = vadd.f32 %v169, %v178
      %v186 = vadd.f32 %v170, %v182
      %v187 = vadd.f32 %v171, %v178
      %v188 = vadd.f32 %v172, %v182
      %189 = vst [vmem:[#allocation8] sm:$0xff] %v185
      %190 = vst [vmem:[#allocation8 + $0x8] sm:$0xff] %v186
      %191 = vst [vmem:[#allocation8 + $0x10] sm:$0xff] %v187
      %192 = vst [vmem:[#allocation8 + $0x18] sm:$0xff] %v188
    $region29: #{tpu_custom_call.1} parent=1 // pred_fallthru
      _
    // Predicated region
    $region30: #{tpu_custom_call.1} parent=1 // pred_check
      _
    $region31: #{tpu_custom_call.1} parent=1 // pred_check_branch
      %194 = sbr.rel (0) target = $region33
    $region32: #{tpu_custom_call.1} parent=1 // pred_region
      %s196 = ssub.s32 512, 512
      %197 = vsyncadd [#allocation5], %s196
      %s198 = sshll.u32 [#allocation8], 4
      %s199 = int_to_ptr.vmem [resolvable:$true] %s198
      %204 = dma.vmem_to_hbm [thread:$0]  %s199, 512, %s3, [#allocation5], 256, 256, 16
    $region33: #{tpu_custom_call.1} parent=1 // pred_fallthru
      _
    // Predicated region
    $region34: #{tpu_custom_call.1} parent=1 // pred_check
      _
    $region35: #{tpu_custom_call.1} parent=1 // pred_check_branch
      %206 = sbr.rel (0) target = $region37
    $region36: #{tpu_custom_call.1} parent=1 // pred_region
      %207 = dma.done [#allocation5], 512
    $region37: #{tpu_custom_call.1} parent=1 // pred_fallthru
      _
    %208 = vsyncpa [#allocation4], 1
    %209 = vsyncpa [#allocation7], 1
    %210 = vsyncpa [#allocation5], 1

</llo_original>
